<compile_context>
chip_gen: v7x
topology: tpu7x:2x2x1
jax: 0.10.0
libtpu: 0.0.40
codegen_flags: <defaults>
</compile_context>

<pallas_src>
import functools

import jax
import jax.numpy as jnp
from jax import lax
from jax.experimental import pallas as pl
from jax.experimental.pallas import tpu as pltpu

ALPHA = 2  # integer exponent -> exact, specialized to a multiply below


# ---------------------------------------------------------------------------
# In-kernel helpers
# ---------------------------------------------------------------------------
def _pow_alpha(dx, dy, alpha):
    if alpha == 2:
        return dx * dx + dy * dy
    return jnp.abs(dx) ** alpha + jnp.abs(dy) ** alpha


def _accumulate_partial(out_ref, v):
    """Accumulate sum(v) into the (1, 8, 128) out block as per-lane partials.

    Uses only lane-aligned (rows,128) slab adds (pure VPU) plus sublane-slab
    stores; the full cross-lane reduce is deferred to the wrapper.  Falls back
    to a masked scalar accumulate for lane-unaligned tiles.
    """
    rows, L = v.shape
    if L % 128 != 0 or (L // 128) > 512:
        total = jnp.sum(v)
        ii = lax.broadcasted_iota(jnp.int32, (8, 128), 0)
        jj = lax.broadcasted_iota(jnp.int32, (8, 128), 1)
        out_ref[0] = out_ref[0] + jnp.where((ii == 0) & (jj == 0), total, 0.0)
        return
    G = L // 128
    # Balanced tree of lane-group adds -> (rows, 128); avoids a long serial
    # dependency chain and any cross-lane/XLU work.
    parts = [v[:, g * 128:(g + 1) * 128] for g in range(G)]
    while len(parts) > 1:
        nxt = [parts[i] + parts[i + 1] for i in range(0, len(parts) - 1, 2)]
        if len(parts) % 2:
            nxt.append(parts[-1])
        parts = nxt
    part = parts[0]                                      # (rows, 128)
    r0 = 0
    while r0 < rows:                                     # fold sublane slabs
        r = min(8, rows - r0)
        out_ref[0, 0:r, :] = out_ref[0, 0:r, :] + part[r0:r0 + r, :]
        r0 += r


# ---------------------------------------------------------------------------
# Kernels
# ---------------------------------------------------------------------------
def _gradient_loss_flat_kernel(gen_ref, gt_ref, out_ref, s_ref,
                               *, alpha, w, hw, c, pad):
    """One batch block; channels flattened into lanes: blocks are (tb, C*H*W).

    s_ref : (tb, pad + H*W) f32 scratch holding [zero pad | channel-summed s].
    """
    tb = gen_ref.shape[0]

    # Channel sum of (gt - gen) via lane-aligned slice adds: no materialized d,
    # no cross-sublane reduce, no C->8 sublane padding of the input buffers.
    s = gt_ref[:, 0:hw].astype(jnp.float32) - gen_ref[:, 0:hw].astype(jnp.float32)
    for ci in range(1, c):
        lo = ci * hw
        s = s + (gt_ref[:, lo:lo + hw].astype(jnp.float32)
                 - gen_ref[:, lo:lo + hw].astype(jnp.float32))

    # Scratch rows hold [zeros(pad) | s(hw)]; shifted windows are static loads.
    s_ref[:, :pad] = jnp.zeros((tb, pad), jnp.float32)
    s_ref[:, pad:] = s
    s_left = s_ref[:, pad - 1: pad - 1 + hw]             # s[..., l-1]
    s_up = s_ref[:, pad - w: pad - w + hw]               # s[..., l-W] (row above)

    col = lax.broadcasted_iota(jnp.int32, (tb, hw), 1)
    dx = s - jnp.where(col % w == 0, 0.0, s_left)        # left zero pad per row
    dy = s - s_up                                        # top pad via zeroed scratch

    v = _pow_alpha(dx, dy, alpha)

    out_ref[...] = jnp.zeros_like(out_ref)               # each block visited once
    _accumulate_partial(out_ref, v)


def _gradient_loss_tiled_kernel(gen_ref, gt_ref, out_ref, s_ref, *, alpha, w, pad):
    """(batch-block, H-tile) grid step on (tb, C, th*W) blocks with a carry row.

    s_ref : (tb, pad + th*W) f32 scratch holding [carry row | channel-summed s].
    """
    hi = pl.program_id(1)
    tb, _, thw = gen_ref.shape

    @pl.when(hi == 0)
    def _init():
        s_ref[:, :pad] = jnp.zeros((tb, pad), jnp.float32)   # top zero pad
        out_ref[...] = jnp.zeros_like(out_ref)

    d = gt_ref[...].astype(jnp.float32) - gen_ref[...].astype(jnp.float32)
    s = jnp.sum(d, axis=1)                               # (tb, thw)

    # Stash s behind the carry region: rows hold [carry(pad) | s(thw)].
    s_ref[:, pad:] = s
    s_left = s_ref[:, pad - 1: pad - 1 + thw]            # s[..., l-1]
    s_up = s_ref[:, pad - w: pad - w + thw]              # s[..., l-W] (prev row/carry)

    col = lax.broadcasted_iota(jnp.int32, (tb, thw), 1)
    dx = s - jnp.where(col % w == 0, 0.0, s_left)        # left zero pad per row
    dy = s - s_up                                        # top pad handled by carry

    v = _pow_alpha(dx, dy, alpha)

    # Carry this tile's last image row into the carry region for the next tile.
    s_ref[:, pad - w: pad] = s[:, thw - w:]

    _accumulate_partial(out_ref, v)


# ---------------------------------------------------------------------------
# Planning: generation-aware VMEM budgets + tile selection
# ---------------------------------------------------------------------------
def _round_up(x, m):
    return -(-x // m) * m


def _carry_pad(w):
    return _round_up(w, 128)                             # lane-aligned carry region


def _sublane_tile(itemsize):
    return {4: 8, 2: 16, 1: 32}.get(int(itemsize), 8)


def _flat_step_bytes(tb, C, HW, itemsize):
    spad = _sublane_tile(itemsize)
    in_bufs = 2 * 2 * _round_up(tb, spad) * C * HW * itemsize   # 2 inputs x dbl buf
    scratch = _round_up(tb, 8) * (_carry_pad(1) + HW) * 4
    interm = 8 * tb * HW * 4                                     # f32 temporaries
    return in_bufs + scratch + interm + 2 * 8 * 128 * 4


def _tiled_step_bytes(tb, C, thw, pad, itemsize):
    spad = _sublane_tile(itemsize)
    in_bufs = 2 * 2 * tb * _round_up(C, spad) * thw * itemsize   # C<8 pads to 8/16
    scratch = _round_up(tb, 8) * (pad + thw) * 4
    interm = 8 * tb * thw * 4
    return in_bufs + scratch + interm + 2 * 8 * 128 * 4


def _budgets():
    """(per-step buffering budget, vmem_limit_bytes) by TPU generation."""
    cap = 0
    try:
        info = pltpu.get_tpu_info()
        for name in ("vmem_capacity_bytes", "vmem_size_bytes", "vmem_bytes"):
            cap = int(getattr(info, name, 0) or 0)
            if cap:
                break
    except Exception:
        cap = 0
    if cap >= (100 << 20):            # 128 MiB VMEM chips: v5e / v6e
        return 48 << 20, 96 << 20
    # 64 MiB chips (v7x) or unknown generation: stay conservative.
    return 24 << 20, 44 << 20


def _divisors_desc(n):
    return [d for d in range(n, 0, -1) if n % d == 0]


def _plan(N, C, H, W, itemsize, step_budget, tb=None, th=None):
    """Returns ("flat", tb) or ("tiled", tb, th)."""
    HW = H * W

    # User-forced tiling (testing / overrides) -> tiled path.
    if tb is not None or th is not None:
        tb = 1 if tb is None else int(tb)
        th = H if th is None else int(th)
        if N % tb or H % th:
            raise ValueError(f"tile sizes must divide input dims: tb={tb}, th={th}")
        if th != H and (th * W) % 128 != 0:
            raise ValueError("th*W must be a multiple of 128 unless th == H")
        return ("tiled", tb, th)

    # ---- Path A: channels-in-lanes flat layout (needs lane-aligned frames and
    # tb a multiple of 8 with >=2 batch blocks for the megacore parallel axis).
    if HW % 128 == 0 and N >= 16:
        want_blocks = 4 if N >= 32 else 2
        for d in _divisors_desc(N):
            if (d % 8 == 0 and N // d >= want_blocks
                    and _flat_step_bytes(d, C, HW, itemsize) <= step_budget):
                return ("flat", d)

    # ---- Path B: (N, C, HW) blocks with optional H tiling.
    pad = _carry_pad(W)
    th_cands = [t for t in _divisors_desc(H) if (t * W) % 128 == 0] or [H]
    min_nb = min(N, 2)                                   # >=2 batch blocks (megacore)
    tb_cap = max(1, N // min_nb)
    th_min = th_cands[-1]
    tbs = 1
    for d in _divisors_desc(N):
        if d <= tb_cap and _tiled_step_bytes(d, C, th_min * W, pad, itemsize) <= step_budget:
            tbs = d
            break
    nb = N // tbs
    need_hb = max(1, -(-4 // nb))                        # aim for >=4 total grid steps
    chosen = None
    for t in th_cands:                                   # descending: largest tile that
        if _tiled_step_bytes(tbs, C, t * W, pad, itemsize) > step_budget:
            continue                                     # still gives enough steps
        if H // t >= need_hb:
            chosen = t
            break
    if chosen is None:                                   # can't reach the step count:
        for t in th_cands:                               # take the largest that fits
            if _tiled_step_bytes(tbs, C, t * W, pad, itemsize) <= step_budget:
                chosen = t
                break
    if chosen is None:
        chosen = th_cands[-1]                            # rely on vmem_limit headroom
    return ("tiled", tbs, chosen)


# ---------------------------------------------------------------------------
# Public entry point
# ---------------------------------------------------------------------------
def gradient_loss(gen_frames, gt_frames, alpha=ALPHA, *, tb=None, th=None):
    """Pallas TPU implementation of Gradient_Loss.forward. Returns a scalar."""
    assert gen_frames.shape == gt_frames.shape
    N, C, H, W = gen_frames.shape
    HW = H * W
    itemsize = jnp.dtype(gen_frames.dtype).itemsize

    step_budget, vmem_limit = _budgets()
    plan = _plan(N, C, H, W, itemsize, step_budget, tb, th)

    cost = pl.CostEstimate(
        flops=2 * N * C * HW + 10 * N * HW,
        transcendentals=0,
        bytes_accessed=2 * N * C * HW * itemsize,
    )

    if plan[0] == "flat":
        tb_ = plan[1]
        nb = N // tb_
        pad = _carry_pad(W)
        kernel = functools.partial(_gradient_loss_flat_kernel,
                                   alpha=alpha, w=W, hw=HW, c=C, pad=pad)
        partials = pl.pallas_call(
            kernel,
            out_shape=jax.ShapeDtypeStruct((nb, 8, 128), jnp.float32),
            grid_spec=pltpu.PrefetchScalarGridSpec(
                num_scalar_prefetch=0,
                grid=(nb,),
                in_specs=[
                    pl.BlockSpec((tb_, C * HW), lambda b: (b, 0)),
                    pl.BlockSpec((tb_, C * HW), lambda b: (b, 0)),
                ],
                out_specs=pl.BlockSpec((1, 8, 128), lambda b: (b, 0, 0)),
                scratch_shapes=[pltpu.VMEM((tb_, pad + HW), jnp.float32)],
            ),
            compiler_params=pltpu.CompilerParams(
                dimension_semantics=("parallel",),
                vmem_limit_bytes=vmem_limit),
            cost_estimate=cost,
        )(gen_frames.reshape(N, C * HW), gt_frames.reshape(N, C * HW))
    else:
        _, tb_, th_ = plan
        nb, hb = N // tb_, H // th_
        thw = th_ * W
        pad = _carry_pad(W)
        kernel = functools.partial(_gradient_loss_tiled_kernel,
                                   alpha=alpha, w=W, pad=pad)
        partials = pl.pallas_call(
            kernel,
            out_shape=jax.ShapeDtypeStruct((nb, 8, 128), jnp.float32),
            grid_spec=pltpu.PrefetchScalarGridSpec(
                num_scalar_prefetch=0,
                grid=(nb, hb),
                in_specs=[
                    pl.BlockSpec((tb_, C, thw), lambda b, h: (b, 0, h)),
                    pl.BlockSpec((tb_, C, thw), lambda b, h: (b, 0, h)),
                ],
                out_specs=pl.BlockSpec((1, 8, 128), lambda b, h: (b, 0, 0)),
                scratch_shapes=[pltpu.VMEM((tb_, pad + thw), jnp.float32)],
            ),
            compiler_params=pltpu.CompilerParams(
                dimension_semantics=("parallel", "arbitrary"),
                vmem_limit_bytes=vmem_limit),
            cost_estimate=cost,
        )(gen_frames.reshape(N, C, HW), gt_frames.reshape(N, C, HW))

    # Per-block per-lane partial sums; the single full reduce + mean happen here.
    return jnp.sum(partials) / (N * H * W)


def gradient_loss_ref(gen, gt, alpha=ALPHA):
    """Pure-JAX reference matching the PyTorch forward exactly."""
    d = gt.astype(jnp.float32) - gen.astype(jnp.float32)
    s = jnp.sum(d, axis=1)                               # (N, H, W)
    s_left = jnp.pad(s, ((0, 0), (0, 0), (1, 0)))[:, :, :-1]
    s_up = jnp.pad(s, ((0, 0), (1, 0), (0, 0)))[:, :-1, :]
    dx = s - s_left
    dy = s - s_up
    return jnp.mean(jnp.abs(dx) ** alpha + jnp.abs(dy) ** alpha)


if __name__ == "__main__":
    key = jax.random.PRNGKey(0)
    k1, k2, k3, k4 = jax.random.split(key, 4)

    # Small shape implied by the module: batch=2, channels=4, 16x16 frames.
    N, C, H, W = 2, 4, 16, 16
    gen = jax.random.normal(k1, (N, C, H, W), dtype=jnp.float32)
    gt = jax.random.normal(k2, (N, C, H, W), dtype=jnp.float32)
    ref = jax.block_until_ready(gradient_loss_ref(gen, gt))

    # 1) auto plan: tiled path, 2 batch blocks x 2 H-tiles = 4 grid steps.
    out = jax.block_until_ready(gradient_loss(gen, gt))
    assert jnp.allclose(out, ref, rtol=1e-4, atol=1e-4), (out, ref)

    # 2) forced tilings: explicit H-tile carry path and whole-frame block.
    out_a = jax.block_until_ready(gradient_loss(gen, gt, tb=1, th=8))
    assert jnp.allclose(out_a, ref, rtol=1e-4, atol=1e-4), (out_a, ref)
    out_b = jax.block_until_ready(gradient_loss(gen, gt, tb=2, th=16))
    assert jnp.allclose(out_b, ref, rtol=1e-4, atol=1e-4), (out_b, ref)

    # 3) bf16 inputs (halved HBM traffic; upcast to f32 inside the kernel).
    gen16, gt16 = gen.astype(jnp.bfloat16), gt.astype(jnp.bfloat16)
    ref16 = jax.block_until_ready(gradient_loss_ref(gen16, gt16))
    out16 = jax.block_until_ready(gradient_loss(gen16, gt16))
    assert jnp.allclose(out16, ref16, rtol=1e-4, atol=1e-4), (out16, ref16)

    # 4) larger batch exercises the channels-in-lanes flat path (tb=8, nb=2).
    N2 = 16
    gen2 = jax.random.normal(k3, (N2, C, H, W), dtype=jnp.float32)
    gt2 = jax.random.normal(k4, (N2, C, H, W), dtype=jnp.float32)
    ref2 = jax.block_until_ready(gradient_loss_ref(gen2, gt2))
    out2 = jax.block_until_ready(gradient_loss(gen2, gt2))
    assert jnp.allclose(out2, ref2, rtol=1e-4, atol=1e-4), (out2, ref2)

    print("KERNEL_OK")
</pallas_src>

<mosaic_0001>
module attributes {stable_mosaic.version = 11 : i64} {
  func.func @_gradient_loss_tiled_kernel(%arg0: i32, %arg1: i32, %arg2: memref<1x4x128xf32, #tpu.memory_space<vmem>>, %arg3: memref<1x4x128xf32, #tpu.memory_space<vmem>>, %arg4: memref<1x8x128xf32, #tpu.memory_space<vmem>>, %arg5: memref<1x256xf32, #tpu.memory_space<vmem>>) attributes {dimension_semantics = [#tpu.dimension_semantics<parallel>, #tpu.dimension_semantics<arbitrary>], iteration_bounds = array<i64: 2, 2>, scalar_prefetch = 0 : i64, scratch_operands = 1 : i64, tpu.core_type = #tpu.core_type<tc>, window_params = [{transform_indices = @transform_0, window_bounds = array<i64: 1, 4, 128>}, {transform_indices = @transform_1, window_bounds = array<i64: 1, 4, 128>}, {transform_indices = @transform_2, window_bounds = array<i64: 1, 8, 128>}]} {
    %c0_i32 = arith.constant 0 : i32
    %0 = arith.cmpi eq, %arg1, %c0_i32 : i32
    %1 = arith.extui %0 : i1 to i32
    %c0_i32_0 = arith.constant 0 : i32
    %2 = arith.cmpi ne, %1, %c0_i32_0 : i32
    scf.if %2 {
      %cst_23 = arith.constant 0.000000e+00 : f32
      %44 = vector.broadcast %cst_23 : f32 to vector<1x128xf32>
      %c0_24 = arith.constant 0 : index
      %c0_25 = arith.constant 0 : index
      %45 = vector.load %arg5[%c0_24, %c0_25] : memref<1x256xf32, #tpu.memory_space<vmem>>, vector<1x128xf32>
      tpu.vector_store %arg5[%c0_24, %c0_25], %44 {strides = array<i32>} : memref<1x256xf32, #tpu.memory_space<vmem>>, vector<1x128xf32>,
      %cst_26 = arith.constant 0.000000e+00 : f32
      %46 = vector.broadcast %cst_26 : f32 to vector<1x8x128xf32>
      %c0_27 = arith.constant 0 : index
      %c0_28 = arith.constant 0 : index
      %c0_29 = arith.constant 0 : index
      %47 = vector.load %arg4[%c0_27, %c0_28, %c0_29] : memref<1x8x128xf32, #tpu.memory_space<vmem>>, vector<1x8x128xf32>
      tpu.vector_store %arg4[%c0_27, %c0_28, %c0_29], %46 {strides = array<i32>} : memref<1x8x128xf32, #tpu.memory_space<vmem>>, vector<1x8x128xf32>,
    } else {
    }
    %c0 = arith.constant 0 : index
    %c0_1 = arith.constant 0 : index
    %c0_2 = arith.constant 0 : index
    %3 = vector.load %arg3[%c0, %c0_1, %c0_2] : memref<1x4x128xf32, #tpu.memory_space<vmem>>, vector<1x4x128xf32>
    %c0_3 = arith.constant 0 : index
    %c0_4 = arith.constant 0 : index
    %c0_5 = arith.constant 0 : index
    %4 = vector.load %arg2[%c0_3, %c0_4, %c0_5] : memref<1x4x128xf32, #tpu.memory_space<vmem>>, vector<1x4x128xf32>
    %5 = arith.subf %3, %4 : vector<1x4x128xf32>
    %cst = arith.constant dense<0.000000e+00> : vector<1x128xf32>
    %6 = vector.multi_reduction <add>, %5, %cst [1] : vector<1x4x128xf32> to vector<1x128xf32>
    %c0_6 = arith.constant 0 : index
    %c128 = arith.constant 128 : index
    %7 = vector.load %arg5[%c0_6, %c128] : memref<1x256xf32, #tpu.memory_space<vmem>>, vector<1x128xf32>
    tpu.vector_store %arg5[%c0_6, %c128], %6 {strides = array<i32>} : memref<1x256xf32, #tpu.memory_space<vmem>>, vector<1x128xf32>,
    %c0_7 = arith.constant 0 : index
    %c127 = arith.constant 127 : index
    %8 = vector.load %arg5[%c0_7, %c127] : memref<1x256xf32, #tpu.memory_space<vmem>>, vector<1x128xf32>
    %c0_8 = arith.constant 0 : index
    %c112 = arith.constant 112 : index
    %9 = vector.load %arg5[%c0_8, %c112] : memref<1x256xf32, #tpu.memory_space<vmem>>, vector<1x128xf32>
    %10 = tpu.iota {dimensions = array<i32: 1>} : vector<1x128xi32>
    %c16_i32 = arith.constant 16 : i32
    %c0_i32_9 = arith.constant 0 : i32
    %11 = arith.cmpi eq, %c16_i32, %c0_i32_9 : i32
    %c1_i32 = arith.constant 1 : i32
    %12 = arith.select %11, %c1_i32, %c16_i32 : i32
    %13 = vector.broadcast %12 : i32 to vector<1x128xi32>
    %14 = arith.remsi %10, %13 : vector<1x128xi32>
    %c0_i32_10 = arith.constant 0 : i32
    %15 = vector.broadcast %c0_i32_10 : i32 to vector<1x128xi32>
    %16 = arith.cmpi ne, %14, %15 : vector<1x128xi32>
    %c0_i32_11 = arith.constant 0 : i32
    %17 = vector.broadcast %c0_i32_11 : i32 to vector<1x128xi32>
    %18 = arith.cmpi slt, %14, %17 : vector<1x128xi32>
    %c0_i32_12 = arith.constant 0 : i32
    %19 = arith.cmpi slt, %12, %c0_i32_12 : i32
    %20 = vector.broadcast %19 : i1 to vector<1x128xi1>
    %21 = vector.broadcast %20 : vector<1x128xi1> to vector<1x128xi1>
    %22 = arith.xori %18, %21 : vector<1x128xi1>
    %23 = arith.andi %22, %16 : vector<1x128xi1>
    %24 = vector.broadcast %12 : i32 to vector<1x128xi32>
    %25 = arith.addi %14, %24 : vector<1x128xi32>
    %26 = arith.select %23, %25, %14 : vector<1x128xi1>, vector<1x128xi32>
    %c0_i32_13 = arith.constant 0 : i32
    %27 = vector.broadcast %c0_i32_13 : i32 to vector<1x128xi32>
    %28 = arith.cmpi eq, %26, %27 : vector<1x128xi32>
    %cst_14 = arith.constant 0.000000e+00 : f32
    %29 = vector.broadcast %cst_14 : f32 to vector<1x128xf32>
    %30 = arith.select %28, %29, %8 : vector<1x128xi1>, vector<1x128xf32>
    %31 = arith.subf %6, %30 : vector<1x128xf32>
    %32 = arith.subf %6, %9 : vector<1x128xf32>
    %33 = arith.mulf %31, %31 : vector<1x128xf32>
    %34 = arith.mulf %32, %32 : vector<1x128xf32>
    %35 = arith.addf %33, %34 : vector<1x128xf32>
    %36 = vector.extract_strided_slice %6 {offsets = [0, 112], sizes = [1, 16], strides = [1, 1]} : vector<1x128xf32> to vector<1x16xf32>
    %c0_15 = arith.constant 0 : index
    %c112_16 = arith.constant 112 : index
    %37 = vector.load %arg5[%c0_15, %c112_16] : memref<1x256xf32, #tpu.memory_space<vmem>>, vector<1x16xf32>
    tpu.vector_store %arg5[%c0_15, %c112_16], %36 {strides = array<i32>} : memref<1x256xf32, #tpu.memory_space<vmem>>, vector<1x16xf32>,
    %c0_17 = arith.constant 0 : index
    %c0_18 = arith.constant 0 : index
    %c0_19 = arith.constant 0 : index
    %38 = vector.load %arg4[%c0_17, %c0_18, %c0_19] : memref<1x8x128xf32, #tpu.memory_space<vmem>>, vector<1x1x128xf32>
    %39 = vector.shape_cast %38 : vector<1x1x128xf32> to vector<1x128xf32>
    %40 = arith.addf %39, %35 : vector<1x128xf32>
    %c0_20 = arith.constant 0 : index
    %c0_21 = arith.constant 0 : index
    %c0_22 = arith.constant 0 : index
    %41 = vector.load %arg4[%c0_20, %c0_21, %c0_22] : memref<1x8x128xf32, #tpu.memory_space<vmem>>, vector<1x1x128xf32>
    %42 = vector.shape_cast %41 : vector<1x1x128xf32> to vector<1x128xf32>
    %43 = vector.shape_cast %40 : vector<1x128xf32> to vector<1x1x128xf32>
    tpu.vector_store %arg4[%c0_20, %c0_21, %c0_22], %43 {strides = array<i32>} : memref<1x8x128xf32, #tpu.memory_space<vmem>>, vector<1x1x128xf32>,
    return
  }
  func.func @transform_0(%arg0: i32, %arg1: i32) -> (i32, i32, i32) {
    %c0_i32 = arith.constant 0 : i32
    %c0_i32_0 = arith.constant 0 : i32
    return %arg0, %c0_i32, %arg1 : i32, i32, i32
  }
  func.func @transform_1(%arg0: i32, %arg1: i32) -> (i32, i32, i32) {
    %c0_i32 = arith.constant 0 : i32
    %c0_i32_0 = arith.constant 0 : i32
    return %arg0, %c0_i32, %arg1 : i32, i32, i32
  }
  func.func @transform_2(%arg0: i32, %arg1: i32) -> (i32, i32, i32) {
    %c0_i32 = arith.constant 0 : i32
    %c0_i32_0 = arith.constant 0 : i32
    %c0_i32_1 = arith.constant 0 : i32
    return %arg0, %c0_i32, %c0_i32_0 : i32, i32, i32
  }
}

</mosaic_0001>

<llo_original>
// kernel: tpu_custom_call.1
$region0: #{tpu_custom_call.1}
  #allocation0 [shape = 'u32[]', space=smem, size = 0x4, offset = 0x4, fixed_abs, tag = 'smem constant byte address 0x4 - core index']
  #allocation1 [shape = 'u32[144,128]{1,0:T(1,128)}', space=vmem, size = 0x12000, scoped, tag = 'internal scratch']
  #allocation2 [shape = 'f32[1,256]{1,0:T(1,128)}', space=vmem, size = 0x400, scoped, tag = 'scratch operand']
  %s0 = inlined_call_operand.hbm [shape: f32[2,4,256], index: 0, kind: input, shape index: {}]
  %s1 = inlined_call_operand.hbm [shape: f32[2,4,256], index: 1, kind: input, shape index: {}]
  %s2 = inlined_call_operand.hbm [shape: f32[2,8,128], index: 2, kind: output, shape index: {}]
  %s3 = sld [smem:[#allocation0]]
  $region53: #{tpu_custom_call.1} parent=0
    _
  %s5 = ssub.s32 1, %s3
  %s6 = scalar_select 0, %s5, %s3
  $region1: #{tpu_custom_call.1} parent=0
    #allocation3 [shape = 'u8[4096]{0}', space=vmem, size = 0x1000, scoped, tag = 'input window, operand 0']
    #allocation4 [shape = 's32[2]{0}', space=sflag, size = 0x8, scoped, tag = 'scoped memory for tpu_custom_call.1']
    #allocation5 [shape = 's32[2]{0}', space=sflag, size = 0x8, scoped, tag = 'scoped memory for tpu_custom_call.1']
    #allocation6 [shape = 'u8[4096]{0}', space=vmem, size = 0x1000, scoped, tag = 'input window, operand 1']
    #allocation7 [shape = 's32[2]{0}', space=sflag, size = 0x8, scoped, tag = 'scoped memory for tpu_custom_call.1']
    #allocation8 [shape = 'u8[8192]{0}', space=vmem, size = 0x2000, scoped, tag = 'output window, operand 0']
    %7 = vsyncpa [#allocation4], 0
    %s8 = scalar_lea.sflag [#allocation4], 1
    %9 = vsyncpa %s8, 0
    %10 = vsyncpa [#allocation7], 0
    %s11 = scalar_lea.sflag [#allocation7], 1
    %12 = vsyncpa %s11, 0
    %13 = vsyncpa [#allocation5], 0
    %s14 = scalar_lea.sflag [#allocation5], 1
    %15 = vsyncpa %s14, 0
    loop: start=0, step=1, limit=6
    $region2: #{tpu_custom_call.1} parent=1 // loop_pre_header
      _
    $region3: #{tpu_custom_call.1} parent=1 // loop_header
      %s17 = sphi 0, %s21
      %p18 = scmp.ge.s32.totalorder %s17, 6
      %s24 = sphi 0, %s36
      %s25 = sphi 0, %s32
      %s26 = sphi 0, %s24
      %s27 = sphi 0, %s25
      %s28 = sphi 0, %s26
      %s29 = sphi 0, %s27
      %s41 = sphi 0, %s43
      %s44 = sphi 0, %s41
      %s45 = sphi 0, %s44
      %s61 = sphi 0, %s45
      %s69 = sphi 0, %s71
      %s72 = sphi 0, %s69
      %s73 = sphi 0, %s72
      %s89 = sphi 0, %s73
      %s95 = sphi 0, %s97
      %s98 = sphi 0, %s95
      %s99 = sphi 0, %s98
      %s115 = sphi 0, %s99
    $region4: #{tpu_custom_call.1} parent=1 // loop_header_branch
      %20 = sbr.rel (%p18) target = $region8
    $region5: #{tpu_custom_call.1} parent=1 // loop_body
      %s22 = ssub.s32 %s17, 1
      %s23 = ssub.s32 %s17, 2
      %s30 = sadd.s32 1, %s25
      %p31 = scmp.ge.s32.totalorder %s30, 2
      %s32 = scalar_select %p31, 0, %s30
      %s33 = sadd.s32 1, %s24
      %s34 = scalar_select %p31, %s33, %s24
      %p35 = scmp.ge.s32.totalorder %s34, 2
      %s36 = scalar_select %p35, 0, %s34
      %s37 = ssub.s32 %s24, %s36
      %s38 = ssub.s32 %s25, %s32
      %s39 = sor.u32 %s37, %s38
      %p40 = scmp.eq.s32.totalorder %s39, 0
      %s42 = sadd.s32 %s41, 1
      %s43 = scalar_select %p40, %s41, %s42
      %p46 = pneg %p40
      %p47 = scmp.eq.s32.totalorder %s17, 3
      %p48 = por %p46, %p47
      %p49 = scmp.ne.s32.totalorder %s41, %s44
      %p50 = scmp.eq.s32.totalorder %s17, 0
      %p51 = por %p49, %p50
      %p52 = scmp.ne.s32.totalorder %s41, %s44
      %p53 = scmp.eq.s32.totalorder %s22, 3
      %p54 = por %p52, %p53
      %p55 = scmp.ne.s32.totalorder %s44, %s45
      %p56 = scmp.eq.s32.totalorder %s22, 0
      %p57 = por %p55, %p56
      %p58 = scmp.ne.s32.totalorder %s44, %s45
      %p59 = scmp.eq.s32.totalorder %s23, 3
      %p60 = por %p58, %p59
      %p62 = scmp.ne.s32.totalorder %s45, %s61
      %p63 = scmp.eq.s32.totalorder %s23, 0
      %p64 = por %p62, %p63
      %s65 = ssub.s32 %s24, %s36
      %s66 = ssub.s32 %s25, %s32
      %s67 = sor.u32 %s65, %s66
      %p68 = scmp.eq.s32.totalorder %s67, 0
      %s70 = sadd.s32 %s69, 1
      %s71 = scalar_select %p68, %s69, %s70
      %p74 = pneg %p68
      %p75 = scmp.eq.s32.totalorder %s17, 3
      %p76 = por %p74, %p75
      %p77 = scmp.ne.s32.totalorder %s69, %s72
      %p78 = scmp.eq.s32.totalorder %s17, 0
      %p79 = por %p77, %p78
      %p80 = scmp.ne.s32.totalorder %s69, %s72
      %p81 = scmp.eq.s32.totalorder %s22, 3
      %p82 = por %p80, %p81
      %p83 = scmp.ne.s32.totalorder %s72, %s73
      %p84 = scmp.eq.s32.totalorder %s22, 0
      %p85 = por %p83, %p84
      %p86 = scmp.ne.s32.totalorder %s72, %s73
      %p87 = scmp.eq.s32.totalorder %s23, 3
      %p88 = por %p86, %p87
      %p90 = scmp.ne.s32.totalorder %s73, %s89
      %p91 = scmp.eq.s32.totalorder %s23, 0
      %p92 = por %p90, %p91
      %s93 = ssub.s32 %s24, %s36
      %p94 = scmp.eq.s32.totalorder %s93, 0
      %s96 = sadd.s32 %s95, 1
      %s97 = scalar_select %p94, %s95, %s96
      %p100 = pneg %p94
      %p101 = scmp.eq.s32.totalorder %s17, 3
      %p102 = por %p100, %p101
      %p103 = scmp.ne.s32.totalorder %s95, %s98
      %p104 = scmp.eq.s32.totalorder %s17, 0
      %p105 = por %p103, %p104
      %p106 = scmp.ne.s32.totalorder %s95, %s98
      %p107 = scmp.eq.s32.totalorder %s22, 3
      %p108 = por %p106, %p107
      %p109 = scmp.ne.s32.totalorder %s98, %s99
      %p110 = scmp.eq.s32.totalorder %s22, 0
      %p111 = por %p109, %p110
      %p112 = scmp.ne.s32.totalorder %s98, %s99
      %p113 = scmp.eq.s32.totalorder %s23, 3
      %p114 = por %p112, %p113
      %p116 = scmp.ne.s32.totalorder %s99, %s115
      %p117 = scmp.eq.s32.totalorder %s23, 0
      %p118 = por %p116, %p117
      %p119 = scmp.le.s32.totalorder 1, %s17
      %p120 = scmp.lt.s32.totalorder %s17, 5
      %p121 = pnand %p119, %p120
      %p122 = pneg %p121
      // Predicated region
      $region9: #{tpu_custom_call.1} parent=5 // pred_check
        _
      $region10: #{tpu_custom_call.1} parent=5 // pred_check_branch
        %124 = sbr.rel (%p121) target = $region12
      $region11: #{tpu_custom_call.1} parent=5 // pred_region
        %s125 = ssub.s32 %s17, 1
      $region12: #{tpu_custom_call.1} parent=5 // pred_fallthru
        _
      %p126 = scmp.lt.s32.totalorder %s17, 4
      // Predicated region
      $region13: #{tpu_custom_call.1} parent=5 // pred_check
        %p127 = pneg %p126
      $region14: #{tpu_custom_call.1} parent=5 // pred_check_branch
        %129 = sbr.rel (%p127) target = $region16
      $region15: #{tpu_custom_call.1} parent=5 // pred_region
        // Predicated region
        $region17: #{tpu_custom_call.1} parent=15 // pred_check
          %p130 = pneg %p51
        $region18: #{tpu_custom_call.1} parent=15 // pred_check_branch
          %132 = sbr.rel (%p130) target = $region20
        $region19: #{tpu_custom_call.1} parent=15 // pred_region
          %s133 = sand.u32 %s41, 1
          %s134 = scalar_lea.sflag [#allocation4], %s133
          %s135 = sand.u32 %s41, 1
          %s136 = smul.addr %s135, 4
          %s137 = scalar_lea.vmem [#allocation3], %s136
          %s139 = ssub.s32 64, 64
          %140 = vsyncadd %s134, %s139
          %s141 = smul.addr %s24, 2
          %s142 = sadd.s32 %s25, %s141
          %s143 = smul.addr %s142, 64
          %s144 = scalar_lea.hbm %s0, %s143
          %s146 = sshll.u32 %s137, 4
          %s147 = int_to_ptr.vmem [resolvable:$true] %s146
          %149 = dma.hbm_to_vmem [thread:$0]  %s144, 64, %s147, %s134
        $region20: #{tpu_custom_call.1} parent=15 // pred_fallthru
          _
        // Predicated region
        $region21: #{tpu_custom_call.1} parent=15 // pred_check
          %p150 = pneg %p79
        $region22: #{tpu_custom_call.1} parent=15 // pred_check_branch
          %152 = sbr.rel (%p150) target = $region24
        $region23: #{tpu_custom_call.1} parent=15 // pred_region
          %s153 = sand.u32 %s69, 1
          %s154 = scalar_lea.sflag [#allocation7], %s153
          %s155 = sand.u32 %s69, 1
          %s156 = smul.addr %s155, 4
          %s157 = scalar_lea.vmem [#allocation6], %s156
          %s159 = ssub.s32 64, 64
          %160 = vsyncadd %s154, %s159
          %s161 = smul.addr %s24, 2
          %s162 = sadd.s32 %s25, %s161
          %s163 = smul.addr %s162, 64
          %s164 = scalar_lea.hbm %s1, %s163
          %s166 = sshll.u32 %s157, 4
          %s167 = int_to_ptr.vmem [resolvable:$true] %s166
          %169 = dma.hbm_to_vmem [thread:$0]  %s164, 64, %s167, %s154
        $region24: #{tpu_custom_call.1} parent=15 // pred_fallthru
          _
      $region16: #{tpu_custom_call.1} parent=5 // pred_fallthru
        _
      %p170 = scmp.le.s32.totalorder 1, %s17
      %p171 = scmp.lt.s32.totalorder %s17, 5
      %p172 = pnand %p170, %p171
      %p173 = pneg %p172
      // Predicated region
      $region25: #{tpu_custom_call.1} parent=5 // pred_check
        _
      $region26: #{tpu_custom_call.1} parent=5 // pred_check_branch
        %175 = sbr.rel (%p172) target = $region28
      $region27: #{tpu_custom_call.1} parent=5 // pred_region
        %s176 = ssub.s32 %s17, 1
        %s177 = sand.u32 %s44, 1
        %s178 = scalar_lea.sflag [#allocation4], %s177
        %s179 = sand.u32 %s44, 1
        %s180 = smul.addr %s179, 4
        %s181 = scalar_lea.vmem [#allocation3], %s180
        // Predicated region
        $region29: #{tpu_custom_call.1} parent=27 // pred_check
          %p182 = pneg %p57
        $region30: #{tpu_custom_call.1} parent=27 // pred_check_branch
          %184 = sbr.rel (%p182) target = $region32
        $region31: #{tpu_custom_call.1} parent=27 // pred_region
          %185 = dma.done %s178, 64
        $region32: #{tpu_custom_call.1} parent=27 // pred_fallthru
          _
        %s186 = sand.u32 %s72, 1
        %s187 = scalar_lea.sflag [#allocation7], %s186
        %s188 = sand.u32 %s72, 1
        %s189 = smul.addr %s188, 4
        %s190 = scalar_lea.vmem [#allocation6], %s189
        // Predicated region
        $region33: #{tpu_custom_call.1} parent=27 // pred_check
          %p191 = pneg %p85
        $region34: #{tpu_custom_call.1} parent=27 // pred_check_branch
          %193 = sbr.rel (%p191) target = $region36
        $region35: #{tpu_custom_call.1} parent=27 // pred_region
          %194 = dma.done %s187, 64
        $region36: #{tpu_custom_call.1} parent=27 // pred_fallthru
          _
        %s195 = sand.u32 %s44, 1
        %s196 = scalar_lea.sflag [#allocation4], %s195
        %s197 = sand.u32 %s44, 1
        %s198 = smul.addr %s197, 4
        %s199 = scalar_lea.vmem [#allocation3], %s198
        %p200 = pneg %p57
        %p201 = pneg %p54
        %s202 = sand.u32 %s72, 1
        %s203 = scalar_lea.sflag [#allocation7], %s202
        %s204 = sand.u32 %s72, 1
        %s205 = smul.addr %s204, 4
        %s206 = scalar_lea.vmem [#allocation6], %s205
        %p207 = pneg %p85
        %p208 = pneg %p82
        %p209 = pneg %p111
        %p210 = pneg %p108
        %s211 = sand.u32 %s98, 1
        %s212 = scalar_lea.sflag [#allocation5], %s211
        %s213 = sand.u32 %s98, 1
        %s214 = smul.addr %s213, 8
        %s215 = scalar_lea.vmem [#allocation8], %s214
        %p216 = scmp.eq.s32.totalorder %s27, 0
        // Predicated region
        $region37: #{tpu_custom_call.1} parent=27 // pred_check
          %p217 = pneg %p216
        $region38: #{tpu_custom_call.1} parent=27 // pred_check_branch
          %219 = sbr.rel (%p217) target = $region40
        $region39: #{tpu_custom_call.1} parent=27 // pred_region
          %v220 = vlaneseq
          %vm221 = vcmp.ge.s32.totalorder %v220, 0
          %vm222 = vcmp.lt.s32.totalorder %v220, 128
          %vm223 = vmand %vm221, %vm222
          %224 = vst.msk [vmem:[#allocation2] sm:$0x1] %vm223, 0.0
          %225 = vst [vmem:[%s215] sm:$0xff] 0.0
        $region40: #{tpu_custom_call.1} parent=27 // pred_fallthru
          _
        %v226 = vld [vmem:[%s190] sm:$0xf]
        %v227 = vld [vmem:[%s181] sm:$0xf]
        %v228 = vsub.f32 %v226, %v227
        %vm229 = vcmask 1043456
        %v230 = vsel %vm229, %v228, 0.0
        %v231 = vrot.slane %v230, 4
        %v232 = vadd.f32 %v230, %v231
        %v233 = vrot.slane %v232, 2
        %v234 = vadd.f32 %v232, %v233
        %v235 = vrot.slane %v234, 1
        %v236 = vadd.f32 %v234, %v235
        %v237 = vlaneseq
        %vm238 = vcmp.ge.s32.totalorder %v237, 0
        %vm239 = vcmp.lt.s32.totalorder %v237, 128
        %vm240 = vmand %vm238, %vm239
        %241 = vst.msk [vmem:[#allocation2 + $0x1] sm:$0x1] %vm240, %v236
        %v242 = vld [vmem:[#allocation2] sm:$0x3]
        %v243 = vlaneseq
        %v244 = vand.u32 %v243, 127
        %vm245 = vcmp.lt.s32.totalorder %v244, 0
        %v246 = vsub.s32 0, %v244
        %v247 = vsel %vm245, %v246, %v244
        %v248 = vshrl.u32 %v247, 4
        %v249 = vand.u32 %v247, 15
        %v250 = vsub.s32 0, %v249
        %v251 = vsel %vm245, %v250, %v249
        %vm252 = vcmp.ne.s32.totalorder %v251, 0
        %vm253 = vcmp.lt.s32.totalorder %v251, 0
        %vm254 = vmand %vm253, %vm252
        %v255 = vadd.s32 %v251, 16
        %v256 = vsel %vm254, %v255, %v251
        %vm257 = vcmp.eq.s32.totalorder %v256, 0
        %v259 = vlaneseq
        %v260 = vshrl.u32 %v259, 7
        %v261 = vsub.s32 0, %v260
        %v262 = vrot.slane %v242, %v261
        %v263 = vlaneseq
        %v264 = vshrl.u32 %v263, 7
        %v265 = vsub.s32 1, %v264
        %v266 = vrot.slane %v242, %v265
        %267 = vrot.lane.b32.xlu0 %v262, 1
        %v268 = vpop.permute.xlu0 %267
        %269 = vrot.lane.b32.xlu0 %v266, 1
        %v270 = vpop.permute.xlu0 %269
        %vm271 = vcmask 7168
        %v272 = vsel %vm271, %v268, %v270
        %v274 = vsel %vm257, 0.0, %v272
        %v275 = vsub.f32 %v236, %v274
        %276 = vrot.lane.b32.xlu0 %v262, 16
        %v277 = vpop.permute.xlu0 %276
        %278 = vrot.lane.b32.xlu0 %v266, 16
        %v279 = vpop.permute.xlu0 %278
        %vm280 = vcmask 130048
        %v281 = vsel %vm280, %v277, %v279
        %v283 = vsub.f32 %v236, %v281
        %v284 = vmul.f32 %v275, %v275
        %v285 = vmul.f32 %v283, %v283
        %v286 = vadd.f32 %v284, %v285
        %vm287 = vcmp.ge.s32.totalorder %v237, 112
        %vm288 = vmand %vm287, %vm239
        %289 = vst.msk [vmem:[#allocation2] sm:$0x1] %vm288, %v236
        %v290 = vld [vmem:[%s215] sm:$0x1]
        %v291 = vadd.f32 %v290, %v286
        %292 = vst [vmem:[%s215] sm:$0x1] %v291
        %s293 = sand.u32 %s98, 1
        %s294 = scalar_lea.sflag [#allocation5], %s293
        %s295 = sand.u32 %s98, 1
        %s296 = smul.addr %s295, 8
        %s297 = scalar_lea.vmem [#allocation8], %s296
        // Predicated region
        $region41: #{tpu_custom_call.1} parent=27 // pred_check
          %p298 = pneg %p108
        $region42: #{tpu_custom_call.1} parent=27 // pred_check_branch
          %300 = sbr.rel (%p298) target = $region44
        $region43: #{tpu_custom_call.1} parent=27 // pred_region
          %s302 = ssub.s32 128, 128
          %303 = vsyncadd %s294, %s302
          %s304 = smul.addr %s26, 128
          %s305 = scalar_lea.hbm %s2, %s304
          %s307 = sshll.u32 %s297, 4
          %s308 = int_to_ptr.vmem [resolvable:$true] %s307
          %310 = dma.vmem_to_hbm [thread:$0]  %s308, 128, %s305, %s294
        $region44: #{tpu_custom_call.1} parent=27 // pred_fallthru
          _
      $region28: #{tpu_custom_call.1} parent=5 // pred_fallthru
        _
      %p311 = scmp.le.s32.totalorder 2, %s17
      // Predicated region
      $region45: #{tpu_custom_call.1} parent=5 // pred_check
        %p312 = pneg %p311
      $region46: #{tpu_custom_call.1} parent=5 // pred_check_branch
        %314 = sbr.rel (%p312) target = $region48
      $region47: #{tpu_custom_call.1} parent=5 // pred_region
        %s315 = ssub.s32 %s17, 2
        // Predicated region
        $region49: #{tpu_custom_call.1} parent=47 // pred_check
          %p316 = pneg %p114
        $region50: #{tpu_custom_call.1} parent=47 // pred_check_branch
          %318 = sbr.rel (%p316) target = $region52
        $region51: #{tpu_custom_call.1} parent=47 // pred_region
          %s319 = sand.u32 %s99, 1
          %s320 = scalar_lea.sflag [#allocation5], %s319
          %s321 = sand.u32 %s99, 1
          %s322 = smul.addr %s321, 8
          %s323 = scalar_lea.vmem [#allocation8], %s322
          %324 = dma.done %s320, 128
        $region52: #{tpu_custom_call.1} parent=47 // pred_fallthru
          _
      $region48: #{tpu_custom_call.1} parent=5 // pred_fallthru
        _
    $region6: #{tpu_custom_call.1} parent=1 // loop_footer
      %s21 = sadd.s32 1, %s17
    $region7: #{tpu_custom_call.1} parent=1 // loop_footer_branch
      %16 = sbr.rel target = $region3
    $region8: #{tpu_custom_call.1} parent=1 // loop_exit
      _
    %325 = vsyncpa [#allocation4], 1
    %s326 = scalar_lea.sflag [#allocation4], 1
    %327 = vsyncpa %s326, 1
    %328 = vsyncpa [#allocation7], 1
    %s329 = scalar_lea.sflag [#allocation7], 1
    %330 = vsyncpa %s329, 1
    %331 = vsyncpa [#allocation5], 1
    %s332 = scalar_lea.sflag [#allocation5], 1
    %333 = vsyncpa %s332, 1

</llo_original>
